<compile_context>
chip_gen: v5e
topology: v5e:2x2
jax: 0.10.0
libtpu: 0.0.40
codegen_flags: <defaults>
</compile_context>

<pallas_src>
import functools

import jax
import jax.numpy as jnp
from jax.experimental import pallas as pl
from jax.experimental.pallas import tpu as pltpu


def _ifn_kernel(f_cut_ref, w_ref, hw_ref, hb_ref, hpw_ref, p_hbm_ref, o_ref, p_vmem,
                *, dlo, dhl, mitr, eps_sq, softplus_bf16):
    """Solve f = f_cyc + f_cut, f_cyc the fixed point of
       T(f_cyc) = P_cyc( f_cyc - d_min * w * h_inv((f_cyc + f_cut)/w) )."""
    # Single-buffered copy of the (pre-transposed) cycle projection HBM -> VMEM.
    pltpu.sync_copy(p_hbm_ref, p_vmem)

    f_cut = f_cut_ref[...]        # (1, M)
    w = w_ref[...]                # (1, M)   (padded entries = 1.0)
    hw = hw_ref[...]              # (H, 1)   positive hidden slopes (pad = 1.0)
    hb = hb_ref[...]              # (H, 1)   hidden biases          (pad = 0.0)
    hpw = hpw_ref[...]            # (H, 1)   softmax weight / slope (pad = 0.0)

    # Loop invariants hoisted off the serial fixed-point chain.
    inv_w = 1.0 / w
    inv_sqrt_w = jax.lax.rsqrt(w)

    def body(carry):
        i, f_cyc, _ = carry
        fs = f_cyc + f_cut                                    # (1, M)
        y = fs * inv_w                                        # potential differences
        x = hw * y + hb                                       # (H, M)
        if softplus_bf16:                                     # static flag (v6e/v7x: bf16 EUP)
            x = x.astype(jnp.bfloat16)
        sp = jnp.maximum(x, 0.0) + jnp.log1p(jnp.exp(-jnp.abs(x)))          # softplus
        mix = jnp.sum(hpw * sp.astype(jnp.float32), axis=0, keepdims=True)  # (1, M)
        # z = f_cyc - d_min * w * h_inv((f_cyc+f_cut)/w)  with constants pre-folded:
        #   w*h_inv(y) = lo*(f_cyc+f_cut) + (hi-lo)*w*mix
        z = f_cyc - dlo * fs - dhl * (w * mix)
        t = jnp.dot(z, p_vmem[...], preferred_element_type=jnp.float32)     # (1, M)
        err_sq = jnp.sum(((t - f_cyc) * inv_sqrt_w) ** 2)     # squared norm, no sqrt
        return i + 1, t, err_sq

    def cond(carry):
        i, _, err_sq = carry
        return jnp.logical_and(i < mitr, err_sq > eps_sq)

    f_cyc0 = jnp.zeros_like(f_cut)
    _, f_cyc, _ = jax.lax.while_loop(
        cond, body, (jnp.int32(0), f_cyc0, jnp.float32(jnp.inf)))
    o_ref[...] = f_cyc + f_cut


def ifn_layer_forward(u, edge_index, edge_weights, h_params, *,
                      dmin, dmax, mitr, eps, softplus_bf16=None):
    """IFNLayer.forward (use_autograd path): returns the (m,) edge flow vector."""
    n = u.shape[0]
    m = edge_weights.shape[0]
    src, dst = edge_index[0], edge_index[1]

    # ---- plain-JAX glue: graph operators --------------------------------------
    # TODO(synk): get_f_cut / cycle_projection sources were not provided; this uses
    # the standard minimum-energy cutset flow and W-weighted cycle-space projection
    # (P_cyc = I - W A^T L^+ A with L = A W A^T), the usual IFN construction.
    e = jnp.arange(m)
    A = jnp.zeros((n, m), jnp.float32)
    A = A.at[src, e].add(1.0).at[dst, e].add(-1.0)             # node-edge incidence
    W = jnp.diag(edge_weights.astype(jnp.float32))
    L = A @ W @ A.T
    L_pinv = jnp.linalg.pinv(L)
    WAtLp = W @ A.T @ L_pinv
    f_cut = WAtLp @ u.astype(jnp.float32)                      # (m,), A f_cut = u
    P = jnp.eye(m, dtype=jnp.float32) - WAtLp @ A              # (m, m) projection

    # TODO(synk): DerivConstrainedPerceptron source not provided; assumed monotone
    # softplus mixture h_inv(y) = lo*y + (hi-lo) * sum_h p_h softplus(w_h y + b_h)/w_h.
    hw, hb, hp = h_params
    H = hw.shape[0]

    # ---- pad to lane/sublane friendly sizes (padding is inert) ----------------
    MP = ((m + 127) // 128) * 128          # edges on lanes -> multiple of 128
    HP = ((H + 7) // 8) * 8                # hidden units on sublanes -> multiple of 8

    f_cut_p = jnp.zeros((1, MP), jnp.float32).at[0, :m].set(f_cut)
    w_p = jnp.ones((1, MP), jnp.float32).at[0, :m].set(edge_weights.astype(jnp.float32))
    P_T_p = jnp.zeros((MP, MP), jnp.float32).at[:m, :m].set(P.T)   # pre-transposed
    hw_p = jnp.ones((HP, 1), jnp.float32).at[:H, 0].set(hw)
    hb_p = jnp.zeros((HP, 1), jnp.float32).at[:H, 0].set(hb)
    hpw_p = jnp.zeros((HP, 1), jnp.float32).at[:H, 0].set(hp / hw)  # hp/hw folded here

    lo, hi = 1.0 / dmax, 1.0 / dmin        # DerivConstrainedPerceptron(1/dmax, 1/dmin, H)
    dlo = float(dmin) * lo
    dhl = float(dmin) * (hi - lo)

    if softplus_bf16 is None:
        # bf16 transcendentals only where the EUP supports them (v6e/v7x); keep the
        # iterate, the matvec accumulation and the convergence norm in f32 always.
        kind = jax.devices()[0].device_kind.lower()
        softplus_bf16 = ("v6" in kind) or ("v7" in kind)

    kernel = functools.partial(
        _ifn_kernel, dlo=dlo, dhl=dhl, mitr=int(mitr),
        eps_sq=float(eps) * float(eps), softplus_bf16=bool(softplus_bf16))

    # Explicit VMEM budget: single-buffered P + small vectors + headroom.
    p_bytes = 4 * MP * MP
    vmem_limit = int(min(112 * 1024 * 1024, p_bytes + (8 << 20)))

    def row_spec():
        return pl.BlockSpec((1, MP), lambda i: (0, 0))

    def col_spec():
        return pl.BlockSpec((HP, 1), lambda i: (0, 0))

    f_pad = pl.pallas_call(
        kernel,
        out_shape=jax.ShapeDtypeStruct((1, MP), jnp.float32),
        grid=(1,),
        in_specs=[row_spec(), row_spec(),                 # f_cut, w
                  col_spec(), col_spec(), col_spec(),     # hw, hb, hp/hw
                  pl.BlockSpec(memory_space=pl.ANY)],     # P^T stays in HBM; copied once
        out_specs=row_spec(),
        scratch_shapes=[pltpu.VMEM((MP, MP), jnp.float32)],   # single-buffered P^T
        compiler_params=pltpu.CompilerParams(
            dimension_semantics=("arbitrary",),
            vmem_limit_bytes=vmem_limit),
    )(f_cut_p, w_p, hw_p, hb_p, hpw_p, P_T_p)

    return f_pad[0, :m]                                    # .squeeze() -> (m,)


if __name__ == "__main__":
    # Small deterministic problem: 8 nodes, 16 edges (ring + chords => cycles exist).
    n, H = 8, 32
    dmin, dmax, mitr, eps = 0.5, 2.0, 100, 1e-5

    edges = [(i, (i + 1) % n) for i in range(n)] + [(i, (i + 2) % n) for i in range(n)]
    src = jnp.array([a for a, _ in edges], jnp.int32)
    dst = jnp.array([b for _, b in edges], jnp.int32)
    edge_index = jnp.stack([src, dst])                     # (2, m)
    m = edge_index.shape[1]

    key = jax.random.PRNGKey(0)
    k1, k2, k3, k4, k5 = jax.random.split(key, 5)
    # Deterministic DerivConstrainedPerceptron parameters (hidden_size = H).
    hw = jnp.exp(0.3 * jax.random.normal(k1, (H,), jnp.float32))   # positive slopes
    hb = 0.5 * jax.random.normal(k2, (H,), jnp.float32)
    hp = jax.nn.softmax(jax.random.normal(k3, (H,), jnp.float32))
    # Balanced nodal injections u (sum to zero) and positive edge weights.
    u = jax.random.normal(k4, (n,), jnp.float32)
    u = u - jnp.mean(u)
    edge_weights = 0.5 + jax.random.uniform(k5, (m,), jnp.float32)

    f = ifn_layer_forward(u, edge_index, edge_weights, (hw, hb, hp),
                          dmin=dmin, dmax=dmax, mitr=mitr, eps=eps)
    f = jax.block_until_ready(f)

    assert f.shape == (m,)
    assert bool(jnp.all(jnp.isfinite(f)))
    # Sanity: the solved flow must satisfy nodal conservation A f = u.
    e = jnp.arange(m)
    A = jnp.zeros((n, m), jnp.float32).at[src, e].add(1.0).at[dst, e].add(-1.0)
    assert float(jnp.max(jnp.abs(A @ f - u))) < 1e-2

    print("KERNEL_OK")
</pallas_src>

<mosaic_0001>
module attributes {stable_mosaic.version = 11 : i64} {
  func.func @_ifn_kernel(%arg0: i32, %arg1: memref<1x128xf32, #tpu.memory_space<vmem>>, %arg2: memref<1x128xf32, #tpu.memory_space<vmem>>, %arg3: memref<32x1xf32, #tpu.memory_space<vmem>>, %arg4: memref<32x1xf32, #tpu.memory_space<vmem>>, %arg5: memref<32x1xf32, #tpu.memory_space<vmem>>, %arg6: memref<128x128xf32, #tpu.memory_space<any>>, %arg7: memref<1x128xf32, #tpu.memory_space<vmem>>, %arg8: memref<128x128xf32, #tpu.memory_space<vmem>>) attributes {dimension_semantics = [#tpu.dimension_semantics<arbitrary>], iteration_bounds = array<i64: 1>, scalar_prefetch = 0 : i64, scratch_operands = 1 : i64, tpu.core_type = #tpu.core_type<tc>, window_params = [{pipeline_mode = #tpu.pipeline_mode<synchronous>, transform_indices = @transform_0, window_bounds = array<i64: 1, 128>}, {pipeline_mode = #tpu.pipeline_mode<synchronous>, transform_indices = @transform_1, window_bounds = array<i64: 1, 128>}, {pipeline_mode = #tpu.pipeline_mode<synchronous>, transform_indices = @transform_2, window_bounds = array<i64: 32, 1>}, {pipeline_mode = #tpu.pipeline_mode<synchronous>, transform_indices = @transform_3, window_bounds = array<i64: 32, 1>}, {pipeline_mode = #tpu.pipeline_mode<synchronous>, transform_indices = @transform_4, window_bounds = array<i64: 32, 1>}, {}, {pipeline_mode = #tpu.pipeline_mode<synchronous>, transform_indices = @transform_6, window_bounds = array<i64: 1, 128>}]} {
    "tpu.region"() ({
      %12 = tpu.sem_alloc : memref<!tpu.dma_semaphore, #tpu.memory_space<semaphore_mem>>
      tpu.enqueue_dma source(%arg6 : memref<128x128xf32, #tpu.memory_space<any>>) target(%arg8 : memref<128x128xf32, #tpu.memory_space<vmem>>) target_semaphore(%12 : memref<!tpu.dma_semaphore, #tpu.memory_space<semaphore_mem>>)
      tpu.wait_dma2 semaphore(%12 : memref<!tpu.dma_semaphore, #tpu.memory_space<semaphore_mem>>) src(%arg6 : memref<128x128xf32, #tpu.memory_space<any>>) dst(%arg8 : memref<128x128xf32, #tpu.memory_space<vmem>>)
      tpu.yield
    }) : () -> ()
    %c0 = arith.constant 0 : index
    %c0_0 = arith.constant 0 : index
    %0 = vector.load %arg1[%c0, %c0_0] : memref<1x128xf32, #tpu.memory_space<vmem>>, vector<1x128xf32>
    %c0_1 = arith.constant 0 : index
    %c0_2 = arith.constant 0 : index
    %1 = vector.load %arg2[%c0_1, %c0_2] : memref<1x128xf32, #tpu.memory_space<vmem>>, vector<1x128xf32>
    %c0_3 = arith.constant 0 : index
    %c0_4 = arith.constant 0 : index
    %2 = vector.load %arg3[%c0_3, %c0_4] : memref<32x1xf32, #tpu.memory_space<vmem>>, vector<32x1xf32>
    %c0_5 = arith.constant 0 : index
    %c0_6 = arith.constant 0 : index
    %3 = vector.load %arg4[%c0_5, %c0_6] : memref<32x1xf32, #tpu.memory_space<vmem>>, vector<32x1xf32>
    %c0_7 = arith.constant 0 : index
    %c0_8 = arith.constant 0 : index
    %4 = vector.load %arg5[%c0_7, %c0_8] : memref<32x1xf32, #tpu.memory_space<vmem>>, vector<32x1xf32>
    %cst = arith.constant 1.000000e+00 : f32
    %5 = vector.broadcast %cst : f32 to vector<1x128xf32>
    %6 = arith.divf %5, %1 : vector<1x128xf32>
    %7 = math.rsqrt %1 : vector<1x128xf32>
    %cst_9 = arith.constant 0.000000e+00 : f32
    %8 = vector.broadcast %cst_9 : f32 to vector<1x128xf32>
    %c0_i32 = arith.constant 0 : i32
    %cst_10 = arith.constant 0x7F800000 : f32
    %9:3 = scf.while (%arg9 = %c0_i32, %arg10 = %8, %arg11 = %cst_10) : (i32, vector<1x128xf32>, f32) -> (i32, vector<1x128xf32>, f32) {
      %c100_i32 = arith.constant 100 : i32
      %12 = arith.cmpi slt, %arg9, %c100_i32 : i32
      %cst_13 = arith.constant 1.000000e-10 : f32
      %13 = arith.cmpf ogt, %arg11, %cst_13 : f32
      %14 = arith.andi %12, %13 : i1
      scf.condition(%14) %arg9, %arg10, %arg11 : i32, vector<1x128xf32>, f32
    } do {
    ^bb0(%arg9: i32, %arg10: vector<1x128xf32>, %arg11: f32):
      %12 = arith.addf %arg10, %0 : vector<1x128xf32>
      %13 = arith.mulf %12, %6 : vector<1x128xf32>
      %14 = vector.broadcast %2 : vector<32x1xf32> to vector<32x128xf32>
      %15 = vector.broadcast %13 : vector<1x128xf32> to vector<32x128xf32>
      %16 = arith.mulf %14, %15 : vector<32x128xf32>
      %17 = vector.broadcast %3 : vector<32x1xf32> to vector<32x128xf32>
      %18 = arith.addf %16, %17 : vector<32x128xf32>
      %cst_13 = arith.constant 0.000000e+00 : f32
      %19 = vector.broadcast %cst_13 : f32 to vector<32x128xf32>
      %20 = arith.maximumf %18, %19 : vector<32x128xf32>
      %21 = math.absf %18 : vector<32x128xf32>
      %cst_14 = arith.constant 0.000000e+00 : f32
      %22 = vector.broadcast %cst_14 : f32 to vector<32x128xf32>
      %23 = arith.subf %22, %21 : vector<32x128xf32>
      %24 = math.exp %23 : vector<32x128xf32>
      %25 = math.log1p %24 : vector<32x128xf32>
      %26 = arith.addf %20, %25 : vector<32x128xf32>
      %27 = vector.broadcast %4 : vector<32x1xf32> to vector<32x128xf32>
      %28 = arith.mulf %27, %26 : vector<32x128xf32>
      %cst_15 = arith.constant dense<0.000000e+00> : vector<128xf32>
      %29 = vector.multi_reduction <add>, %28, %cst_15 [0] : vector<32x128xf32> to vector<128xf32>
      %30 = vector.shape_cast %29 : vector<128xf32> to vector<1x128xf32>
      %cst_16 = arith.constant 2.500000e-01 : f32
      %31 = vector.broadcast %cst_16 : f32 to vector<1x128xf32>
      %32 = arith.mulf %31, %12 : vector<1x128xf32>
      %33 = arith.subf %arg10, %32 : vector<1x128xf32>
      %34 = arith.mulf %1, %30 : vector<1x128xf32>
      %cst_17 = arith.constant 7.500000e-01 : f32
      %35 = vector.broadcast %cst_17 : f32 to vector<1x128xf32>
      %36 = arith.mulf %35, %34 : vector<1x128xf32>
      %37 = arith.subf %33, %36 : vector<1x128xf32>
      %c0_18 = arith.constant 0 : index
      %c0_19 = arith.constant 0 : index
      %38 = vector.load %arg8[%c0_18, %c0_19] : memref<128x128xf32, #tpu.memory_space<vmem>>, vector<128x128xf32>
      %cst_20 = arith.constant dense<0.000000e+00> : vector<1x128xf32>
      %39 = tpu.matmul %37, %38, %cst_20 {dimension_numbers = #tpu.dot_dimension_numbers<[1], [0], [0], [1], [0, 0, 1, 1], [], []>} : vector<1x128xf32>, vector<128x128xf32>, vector<1x128xf32> -> vector<1x128xf32>
      %40 = arith.subf %39, %arg10 : vector<1x128xf32>
      %41 = arith.mulf %40, %7 : vector<1x128xf32>
      %42 = arith.mulf %41, %41 : vector<1x128xf32>
      %43 = vector.shape_cast %42 : vector<1x128xf32> to vector<1x1x128xf32>
      %cst_21 = arith.constant dense<0.000000e+00> : vector<1xf32>
      %44 = vector.multi_reduction <add>, %43, %cst_21 [1, 2] : vector<1x1x128xf32> to vector<1xf32>
      %45 = vector.shape_cast %44 : vector<1xf32> to vector<1x1x1xf32>
      %46 = vector.extract %45[0, 0, 0] : f32 from vector<1x1x1xf32>
      %c1_i32 = arith.constant 1 : i32
      %47 = arith.addi %arg9, %c1_i32 : i32
      scf.yield %47, %39, %46 : i32, vector<1x128xf32>, f32
    }
    %10 = arith.addf %9#1, %0 : vector<1x128xf32>
    %c0_11 = arith.constant 0 : index
    %c0_12 = arith.constant 0 : index
    %11 = vector.load %arg7[%c0_11, %c0_12] : memref<1x128xf32, #tpu.memory_space<vmem>>, vector<1x128xf32>
    tpu.vector_store %arg7[%c0_11, %c0_12], %10 {strides = array<i32>} : memref<1x128xf32, #tpu.memory_space<vmem>>, vector<1x128xf32>,
    return
  }
  func.func @transform_0(%arg0: i32) -> (i32, i32) {
    %c0_i32 = arith.constant 0 : i32
    %c0_i32_0 = arith.constant 0 : i32
    %c0_i32_1 = arith.constant 0 : i32
    return %c0_i32, %c0_i32_0 : i32, i32
  }
  func.func @transform_1(%arg0: i32) -> (i32, i32) {
    %c0_i32 = arith.constant 0 : i32
    %c0_i32_0 = arith.constant 0 : i32
    %c0_i32_1 = arith.constant 0 : i32
    return %c0_i32, %c0_i32_0 : i32, i32
  }
  func.func @transform_2(%arg0: i32) -> (i32, i32) {
    %c0_i32 = arith.constant 0 : i32
    %c0_i32_0 = arith.constant 0 : i32
    %c0_i32_1 = arith.constant 0 : i32
    return %c0_i32, %c0_i32_0 : i32, i32
  }
  func.func @transform_3(%arg0: i32) -> (i32, i32) {
    %c0_i32 = arith.constant 0 : i32
    %c0_i32_0 = arith.constant 0 : i32
    %c0_i32_1 = arith.constant 0 : i32
    return %c0_i32, %c0_i32_0 : i32, i32
  }
  func.func @transform_4(%arg0: i32) -> (i32, i32) {
    %c0_i32 = arith.constant 0 : i32
    %c0_i32_0 = arith.constant 0 : i32
    %c0_i32_1 = arith.constant 0 : i32
    return %c0_i32, %c0_i32_0 : i32, i32
  }
  func.func @transform_6(%arg0: i32) -> (i32, i32) {
    %c0_i32 = arith.constant 0 : i32
    %c0_i32_0 = arith.constant 0 : i32
    %c0_i32_1 = arith.constant 0 : i32
    return %c0_i32, %c0_i32_0 : i32, i32
  }
}

</mosaic_0001>

<llo_original>
// kernel: tpu_custom_call.1
$region0: #{tpu_custom_call.1}
  #allocation0 [shape = 'u32[]', space=smem, size = 0x4, offset = 0x4, fixed_abs, tag = 'smem constant byte address 0x4 - core index']
  #allocation1 [shape = 'u32[72,128]{1,0:T(1,128)}', space=vmem, size = 0x9000, scoped, tag = 'internal scratch']
  #allocation2 [shape = 'f32[128,128]{1,0:T(8,128)}', space=vmem, size = 0x10000, scoped, tag = 'scratch operand']
  #allocation6 [shape = 's32[]', space=sflag, size = 0x4, offset = 0, fixed_abs, tag = 'sflag constant byte address 0x0 - dummy sync flag']
  #allocation7 [shape = 's32[]', space=sflag, size = 0x4, offset = 0, fixed_abs, tag = 'sflag constant byte address 0x0 - dummy sync flag']
  #allocation8 [shape = 'u32[]', space=smem, size = 0x4, offset = 0x44, fixed_abs, tag = 'smem constant byte address 0x44 - assertion arg 0']
  #allocation9 [shape = 'u32[]', space=smem, size = 0x4, offset = 0x48, fixed_abs, tag = 'smem constant byte address 0x48 - assertion arg 1']
  %s0 = inlined_call_operand.vmem [shape: f32[1,128], index: 0, kind: input, shape index: {}]
  %s1 = inlined_call_operand.vmem [shape: f32[1,128], index: 1, kind: input, shape index: {}]
  %s2 = inlined_call_operand.vmem [shape: f32[32,1], index: 2, kind: input, shape index: {}]
  %s3 = inlined_call_operand.vmem [shape: f32[32,1], index: 3, kind: input, shape index: {}]
  %s4 = inlined_call_operand.vmem [shape: f32[32,1], index: 4, kind: input, shape index: {}]
  %s5 = inlined_call_operand.hbm [shape: f32[128,128], index: 5, kind: input, shape index: {}]
  %s6 = inlined_call_operand.hbm [shape: f32[1,128], index: 6, kind: output, shape index: {}]
  %s7 = sld [smem:[#allocation0]]
  $region42: #{tpu_custom_call.1} parent=0
    _
  %s9 = ssub.s32 1, %s7
  %s10 = scalar_select 0, %s9, %s7
  $region1: #{tpu_custom_call.1} parent=0
    #allocation3 [shape = 'u8[512]{0}', space=vmem, size = 0x400, scoped, tag = 'output window, operand 0, single buffered']
    #allocation4 [shape = 's32[1]{0}', space=sflag, size = 0x4, scoped, tag = 'scoped memory for tpu_custom_call.1']
    %11 = vsyncpa [#allocation4], 0
    // Predicated region
    $region2: #{tpu_custom_call.1} parent=1 // pred_check
      _
    $region3: #{tpu_custom_call.1} parent=1 // pred_check_branch
      %13 = sbr.rel (0) target = $region5
    $region4: #{tpu_custom_call.1} parent=1 // pred_region
      _
    $region5: #{tpu_custom_call.1} parent=1 // pred_fallthru
      _
    // Predicated region
    $region6: #{tpu_custom_call.1} parent=1 // pred_check
      _
    $region7: #{tpu_custom_call.1} parent=1 // pred_check_branch
      %15 = sbr.rel (0) target = $region9
    $region8: #{tpu_custom_call.1} parent=1 // pred_region
      _
    $region9: #{tpu_custom_call.1} parent=1 // pred_fallthru
      _
    // Predicated region
    $region10: #{tpu_custom_call.1} parent=1 // pred_check
      _
    $region11: #{tpu_custom_call.1} parent=1 // pred_check_branch
      %17 = sbr.rel (0) target = $region13
    $region12: #{tpu_custom_call.1} parent=1 // pred_region
      _
    $region13: #{tpu_custom_call.1} parent=1 // pred_fallthru
      _
    // Predicated region
    $region14: #{tpu_custom_call.1} parent=1 // pred_check
      _
    $region15: #{tpu_custom_call.1} parent=1 // pred_check_branch
      %19 = sbr.rel (0) target = $region17
    $region16: #{tpu_custom_call.1} parent=1 // pred_region
      _
    $region17: #{tpu_custom_call.1} parent=1 // pred_fallthru
      _
    // Predicated region
    $region18: #{tpu_custom_call.1} parent=1 // pred_check
      _
    $region19: #{tpu_custom_call.1} parent=1 // pred_check_branch
      %21 = sbr.rel (0) target = $region21
    $region20: #{tpu_custom_call.1} parent=1 // pred_region
      _
    $region21: #{tpu_custom_call.1} parent=1 // pred_fallthru
      _
    $region22: #{tpu_custom_call.1} parent=1
      #allocation5 [shape = 's32[1]{0}', space=sflag, size = 0x4, scoped, tag = 'scoped memory for tpu_custom_call.1']
      // Predicated region
      $region23: #{tpu_custom_call.1} parent=22 // pred_check
        _
      $region24: #{tpu_custom_call.1} parent=22 // pred_check_branch
        %23 = sbr.rel target = $region26
      $region25: #{tpu_custom_call.1} parent=22 // pred_region
        %24 = sst [smem:[#allocation8]] [#allocation7]
        %25 = sst [smem:[#allocation9]] [#allocation6]
      $region26: #{tpu_custom_call.1} parent=22 // pred_fallthru
        _
      %27 = shalt.err (0)
      %s29 = sshll.u32 %s5, 4
      %s30 = int_to_ptr.hbm [resolvable:$true] %s29
      %s31 = sshll.u32 [#allocation2], 4
      %s32 = int_to_ptr.vmem [resolvable:$true] %s31
      %34 = dma.hbm_to_vmem [thread:$0]  %s30, 2048, %s32, [#allocation5]
      %s35 = smul.u32 128, 1
      %s36 = sshll.u32 %s35, 4
      %37 = dma.done [#allocation5], %s36
    %v38 = vld [vmem:[%s0] sm:$0x1]
    %v39 = vld [vmem:[%s1] sm:$0x1]
    %v40 = vld [vmem:[%s2] sm:$0xff]
    %v41 = vld [vmem:[%s2 + $0x8] sm:$0xff]
    %v42 = vld [vmem:[%s2 + $0x10] sm:$0xff]
    %v43 = vld [vmem:[%s2 + $0x18] sm:$0xff]
    %v44 = vld [vmem:[%s3] sm:$0xff]
    %v45 = vld [vmem:[%s3 + $0x8] sm:$0xff]
    %v46 = vld [vmem:[%s3 + $0x10] sm:$0xff]
    %v47 = vld [vmem:[%s3 + $0x18] sm:$0xff]
    %v48 = vld [vmem:[%s4] sm:$0xff]
    %v49 = vld [vmem:[%s4 + $0x8] sm:$0xff]
    %v50 = vld [vmem:[%s4 + $0x10] sm:$0xff]
    %v51 = vld [vmem:[%s4 + $0x18] sm:$0xff]
    %v52 = vrcp.pop %v39
    %v53 = vmul.f32 %v39, %v52
    %v54 = vsub.f32 1.0, %v53
    %v55 = vmul.f32 %v52, %v54
    %v56 = vadd.f32 %v52, %v55
    %vm57 = vweird.f32 %v39
    %vm58 = vweird.f32 %v52
    %vm59 = vmor %vm57, %vm58
    %v60 = vsel %vm59, %v52, %v56
    %v61 = vand.u32 2147483647, %v39
    %vm62 = vcmp.eq.f32.partialorder %v61, 8.507059e+37
    %v63 = vand.u32 %v39, 2147483648
    %v64 = vor.u32 1.1754944e-38, %v63
    %v65 = vsel %vm62, %v64, %v60
    %v66 = vmul.f32 1.0, %v65
    %v67 = vrsqrt.pop %v39
    %v68 = vmul.f32 %v67, %v39
    %v69 = vmul.f32 %v68, %v67
    %v70 = vmul.f32 0.5, %v69
    %v71 = vsub.f32 1.5, %v70
    %v72 = vmul.f32 %v67, %v71
    %vm73 = vweird.f32 %v39
    %vm74 = vweird.f32 %v67
    %vm75 = vmor %vm73, %vm74
    %v76 = vsel %vm75, %v67, %v72
    // While loop
    $region27: #{tpu_custom_call.1} parent=1 // loop_pre_header
      _
    $region28: #{tpu_custom_call.1} parent=1 // loop_header
      %s78 = sphi 0, %s286
      %v79 = vphi 0.0, %v270
      %s80 = sphi inf, %s285
      %p81 = scmp.lt.s32.totalorder %s78, 100
      %p82 = scmp.gt.f32.partialorder %s80, 1e-10
      %p83 = pnand %p81, %p82
      %p84 = pneg %p83
    $region29: #{tpu_custom_call.1} parent=1 // loop_header_branch
      %86 = sbr.rel (%p83) target = $region33
    $region30: #{tpu_custom_call.1} parent=1 // loop_body
      %v87 = vadd.f32 %v79, %v38
      %v88 = vmul.f32 %v87, %v66
      %90 = vset.pattern.permute.xlu0 0
      %91 = vperm.xlu0 %90, %v40
      %v92 = vpop.permute.xlu0 %91
      %95 = vset.pattern.permute.xlu0 0
      %96 = vperm.xlu0 %95, %v41
      %v97 = vpop.permute.xlu0 %96
      %100 = vset.pattern.permute.xlu0 0
      %101 = vperm.xlu0 %100, %v42
      %v102 = vpop.permute.xlu0 %101
      %105 = vset.pattern.permute.xlu0 0
      %106 = vperm.xlu0 %105, %v43
      %v107 = vpop.permute.xlu0 %106
      %v109 = vperm.slane %v88, 0
      %v110 = vmul.f32 %v92, %v109
      %v111 = vmul.f32 %v97, %v109
      %v112 = vmul.f32 %v102, %v109
      %v113 = vmul.f32 %v107, %v109
      %115 = vset.pattern.permute.xlu0 0
      %116 = vperm.xlu0 %115, %v44
      %v117 = vpop.permute.xlu0 %116
      %120 = vset.pattern.permute.xlu0 0
      %121 = vperm.xlu0 %120, %v45
      %v122 = vpop.permute.xlu0 %121
      %125 = vset.pattern.permute.xlu0 0
      %126 = vperm.xlu0 %125, %v46
      %v127 = vpop.permute.xlu0 %126
      %130 = vset.pattern.permute.xlu0 0
      %131 = vperm.xlu0 %130, %v47
      %v132 = vpop.permute.xlu0 %131
      %v134 = vadd.f32 %v110, %v117
      %v135 = vadd.f32 %v111, %v122
      %v136 = vadd.f32 %v112, %v127
      %v137 = vadd.f32 %v113, %v132
      %v138 = vmax.f32 %v134, 0.0
      %v139 = vmax.f32 %v135, 0.0
      %v140 = vmax.f32 %v136, 0.0
      %v141 = vmax.f32 %v137, 0.0
      %v142 = vand.u32 2147483647, %v134
      %v143 = vand.u32 2147483647, %v135
      %v144 = vand.u32 2147483647, %v136
      %v145 = vand.u32 2147483647, %v137
      %v146 = vsub.f32 0.0, %v142
      %v147 = vsub.f32 0.0, %v143
      %v148 = vsub.f32 0.0, %v144
      %v149 = vsub.f32 0.0, %v145
      %v150 = vmul.f32 %v146, 1.442695
      %v151 = vpow.pop %v150
      %v152 = vmul.f32 %v147, 1.442695
      %v153 = vpow.pop %v152
      %v154 = vmul.f32 %v148, 1.442695
      %v155 = vpow.pop %v154
      %v156 = vmul.f32 %v149, 1.442695
      %v157 = vpow.pop %v156
      %v158 = vadd.f32 %v151, 1.0
      %v159 = vlog2.pop %v158
      %v160 = vmul.f32 %v159, 0.6931472
      %v161 = vmul.f32 -0.5, %v151
      %v162 = vadd.f32 %v161, 1.0
      %v163 = vmul.f32 %v162, %v151
      %v164 = vand.u32 2147483647, %v151
      %vm165 = vcmp.lt.f32.partialorder %v164, 0.0004427343
      %v166 = vsel %vm165, %v163, %v160
      %v167 = vadd.f32 %v153, 1.0
      %v168 = vlog2.pop %v167
      %v169 = vmul.f32 %v168, 0.6931472
      %v170 = vmul.f32 -0.5, %v153
      %v171 = vadd.f32 %v170, 1.0
      %v172 = vmul.f32 %v171, %v153
      %v173 = vand.u32 2147483647, %v153
      %vm174 = vcmp.lt.f32.partialorder %v173, 0.0004427343
      %v175 = vsel %vm174, %v172, %v169
      %v176 = vadd.f32 %v155, 1.0
      %v177 = vlog2.pop %v176
      %v178 = vmul.f32 %v177, 0.6931472
      %v179 = vmul.f32 -0.5, %v155
      %v180 = vadd.f32 %v179, 1.0
      %v181 = vmul.f32 %v180, %v155
      %v182 = vand.u32 2147483647, %v155
      %vm183 = vcmp.lt.f32.partialorder %v182, 0.0004427343
      %v184 = vsel %vm183, %v181, %v178
      %v185 = vadd.f32 %v157, 1.0
      %v186 = vlog2.pop %v185
      %v187 = vmul.f32 %v186, 0.6931472
      %v188 = vmul.f32 -0.5, %v157
      %v189 = vadd.f32 %v188, 1.0
      %v190 = vmul.f32 %v189, %v157
      %v191 = vand.u32 2147483647, %v157
      %vm192 = vcmp.lt.f32.partialorder %v191, 0.0004427343
      %v193 = vsel %vm192, %v190, %v187
      %v194 = vadd.f32 %v138, %v166
      %v195 = vadd.f32 %v139, %v175
      %v196 = vadd.f32 %v140, %v184
      %v197 = vadd.f32 %v141, %v193
      %199 = vset.pattern.permute.xlu0 0
      %200 = vperm.xlu0 %199, %v48
      %v201 = vpop.permute.xlu0 %200
      %204 = vset.pattern.permute.xlu0 0
      %205 = vperm.xlu0 %204, %v49
      %v206 = vpop.permute.xlu0 %205
      %209 = vset.pattern.permute.xlu0 0
      %210 = vperm.xlu0 %209, %v50
      %v211 = vpop.permute.xlu0 %210
      %214 = vset.pattern.permute.xlu0 0
      %215 = vperm.xlu0 %214, %v51
      %v216 = vpop.permute.xlu0 %215
      %v218 = vmul.f32 %v201, %v194
      %v219 = vmul.f32 %v206, %v195
      %v220 = vmul.f32 %v211, %v196
      %v221 = vmul.f32 %v216, %v197
      %v222 = vadd.f32 %v218, %v219
      %v223 = vadd.f32 %v222, %v220
      %v224 = vadd.f32 %v223, %v221
      %v225 = vrot.slane %v224, 4
      %v226 = vadd.f32 %v224, %v225
      %v227 = vrot.slane %v226, 2
      %v228 = vadd.f32 %v226, %v227
      %v229 = vrot.slane %v228, 1
      %v230 = vadd.f32 %v228, %v229
      %v231 = vmul.f32 %v87, 0.25
      %v232 = vsub.f32 %v79, %v231
      %v233 = vmul.f32 %v39, %v230
      %v234 = vmul.f32 %v233, 0.75
      %v235 = vsub.f32 %v232, %v234
      %v236 = vld [vmem:[#allocation2] sm:$0xff]
      %v237 = vld [vmem:[#allocation2 + $0x8] sm:$0xff]
      %v238 = vld [vmem:[#allocation2 + $0x10] sm:$0xff]
      %v239 = vld [vmem:[#allocation2 + $0x18] sm:$0xff]
      %v240 = vld [vmem:[#allocation2 + $0x20] sm:$0xff]
      %v241 = vld [vmem:[#allocation2 + $0x28] sm:$0xff]
      %v242 = vld [vmem:[#allocation2 + $0x30] sm:$0xff]
      %v243 = vld [vmem:[#allocation2 + $0x38] sm:$0xff]
      %v244 = vld [vmem:[#allocation2 + $0x40] sm:$0xff]
      %v245 = vld [vmem:[#allocation2 + $0x48] sm:$0xff]
      %v246 = vld [vmem:[#allocation2 + $0x50] sm:$0xff]
      %v247 = vld [vmem:[#allocation2 + $0x58] sm:$0xff]
      %v248 = vld [vmem:[#allocation2 + $0x60] sm:$0xff]
      %v249 = vld [vmem:[#allocation2 + $0x68] sm:$0xff]
      %v250 = vld [vmem:[#allocation2 + $0x70] sm:$0xff]
      %v251 = vld [vmem:[#allocation2 + $0x78] sm:$0xff]
      %252 = vmatpush.msra.mxu0 %v251
      %253 = vmatpush.msra.mxu0 %v250
      %254 = vmatpush.msra.mxu0 %v249
      %255 = vmatpush.msra.mxu0 %v248
      %256 = vmatpush.msra.mxu0 %v247
      %257 = vmatpush.msra.mxu0 %v246
      %258 = vmatpush.msra.mxu0 %v245
      %259 = vmatpush.msra.mxu0 %v244
      %260 = vmatpush.msra.mxu0 %v243
      %261 = vmatpush.msra.mxu0 %v242
      %262 = vmatpush.msra.mxu0 %v241
      %263 = vmatpush.msra.mxu0 %v240
      %264 = vmatpush.msra.mxu0 %v239
      %265 = vmatpush.msra.mxu0 %v238
      %266 = vmatpush.msra.mxu0 %v237
      %267 = vmatpush.msra.mxu0 %v236
      %268 = vmatmul.f32.gmra.mxu0 %v235
      %v269 = vpop.f32.mrf.mxu0
      %v270 = vadd.f32 0.0, %v269
      %271 = vdwg.mxu0
      %v272 = vsub.f32 %v270, %v79
      %v273 = vmul.f32 %v272, %v76
      %v274 = vmul.f32 %v273, %v273
      %vm275 = vcmask 1040384
      %v276 = vsel %vm275, %v274, 0.0
      %277 = vadd.xlane.f32.xlu0 %v276
      %v278 = vpop.xlane.xlu0 %277
      %v279 = vrot.slane %v278, 4
      %v280 = vadd.f32 %v278, %v279
      %v281 = vrot.slane %v280, 2
      %v282 = vadd.f32 %v280, %v281
      %v283 = vrot.slane %v282, 1
      %v284 = vadd.f32 %v282, %v283
      %s285 = vtos %v284
      %s286 = sadd.s32 %s78, 1
    $region31: #{tpu_custom_call.1} parent=1 // loop_footer
      _
    $region32: #{tpu_custom_call.1} parent=1 // loop_footer_branch
      %77 = sbr.rel target = $region28
    $region33: #{tpu_custom_call.1} parent=1 // loop_exit
      _
    %v287 = vadd.f32 %v79, %v38
    %288 = vst [vmem:[#allocation3] sm:$0x1] %v287
    // Predicated region
    $region34: #{tpu_custom_call.1} parent=1 // pred_check
      _
    $region35: #{tpu_custom_call.1} parent=1 // pred_check_branch
      %290 = sbr.rel (0) target = $region37
    $region36: #{tpu_custom_call.1} parent=1 // pred_region
      %292 = vsyncadd [#allocation4], 0
      %s294 = sshll.u32 [#allocation3], 4
      %s295 = int_to_ptr.vmem [resolvable:$true] %s294
      %s296 = sshll.u32 %s6, 4
      %s297 = int_to_ptr.hbm [resolvable:$true] %s296
      %299 = dma.vmem_to_hbm [thread:$0]  %s295, 16, %s297, [#allocation4]
    $region37: #{tpu_custom_call.1} parent=1 // pred_fallthru
      _
    // Predicated region
    $region38: #{tpu_custom_call.1} parent=1 // pred_check
      _
    $region39: #{tpu_custom_call.1} parent=1 // pred_check_branch
      %301 = sbr.rel (0) target = $region41
    $region40: #{tpu_custom_call.1} parent=1 // pred_region
      %303 = dma.done [#allocation4], 16
    $region41: #{tpu_custom_call.1} parent=1 // pred_fallthru
      _
    %304 = vsyncpa [#allocation4], 1

</llo_original>
